<compile_context>
chip_gen: v7x
topology: tpu7x:2x2x1
jax: 0.10.0
libtpu: 0.0.40
codegen_flags: <defaults>
</compile_context>

<pallas_src>
import functools

import jax
import jax.numpy as jnp
from jax.experimental import pallas as pl
from jax.experimental.pallas import tpu as pltpu


def _round_up(n, m):
    return ((n + m - 1) // m) * m


def _actor_sigma1_kernel(a, x_ref, w1_ref, b1_ref, wh_ref, bh_ref, out_ref):
    # fc1: bf16 operands, f32 accumulate.  (TB, Cin) @ (Cin, H) + (1, H)
    h = jnp.dot(x_ref[...], w1_ref[...],
                preferred_element_type=jnp.float32) + b1_ref[...]

    # softmax over the hidden axis (f32, numerically stable)
    h = h - jnp.max(h, axis=-1, keepdims=True)
    e = jnp.exp(h)
    p = e * pl.reciprocal(jnp.sum(e, axis=-1, keepdims=True), approx=True)

    # Fused mu/sigma heads: (TB, H) @ (H, L) + (1, L), lane-dense (L >= 128).
    #   lanes [0, a)   -> mu
    #   lanes [a, 2a)  -> sigma logits (gain already folded into the bias)
    #   lanes [2a, L)  -> zero padding
    raw = jnp.dot(p.astype(wh_ref.dtype), wh_ref[...],
                  preferred_element_type=jnp.float32) + bh_ref[...]
    lane = jax.lax.broadcasted_iota(jnp.int32, raw.shape, dimension=1)
    sigma_lane = (lane >= a) & (lane < 2 * a)
    out_ref[...] = jnp.where(sigma_lane, jnp.exp(raw), raw).astype(out_ref.dtype)


def actor_sigma1_forward(x, params):
    """ActorSigma1 forward in one Pallas call.

    x: (B, Cin) float32
    params: output of prepare_params()
    Returns (mu, sigma), each (B, A) float32.
    """
    B, Cin = x.shape
    H = params["w1t"].shape[1]
    L = params["w_heads"].shape[1]
    A = int(params["num_outputs"])

    # Batch tiling: weights stay VMEM-resident across the grid; x / out pipeline.
    TB = 512 if B >= 512 else _round_up(B, 8)
    B_pad = _round_up(B, TB)
    x_in = x.astype(jnp.bfloat16)
    if B_pad != B:
        x_in = jnp.pad(x_in, ((0, B_pad - B), (0, 0)))
    grid = (B_pad // TB,)

    flops = 2 * B_pad * Cin * H + 2 * B_pad * H * L
    bytes_accessed = (B_pad * Cin * 2 + Cin * H * 2 + H * 4
                      + H * L * 2 + L * 4 + B_pad * L * 4)

    out = pl.pallas_call(
        functools.partial(_actor_sigma1_kernel, A),
        out_shape=jax.ShapeDtypeStruct((B_pad, L), jnp.float32),
        grid=grid,
        in_specs=[
            pl.BlockSpec((TB, Cin), lambda i: (i, 0)),   # x tile (pipelined)
            pl.BlockSpec((Cin, H), lambda i: (0, 0)),    # W1^T       (resident)
            pl.BlockSpec((1, H), lambda i: (0, 0)),      # b1         (resident)
            pl.BlockSpec((H, L), lambda i: (0, 0)),      # fused W    (resident)
            pl.BlockSpec((1, L), lambda i: (0, 0)),      # fused bias (resident)
        ],
        out_specs=pl.BlockSpec((TB, L), lambda i: (i, 0)),
        compiler_params=pltpu.CompilerParams(
            dimension_semantics=("parallel",)),
        cost_estimate=pl.CostEstimate(
            flops=flops,
            transcendentals=B_pad * (H + L),
            bytes_accessed=bytes_accessed),
    )(x_in, params["w1t"], params["b1"], params["w_heads"], params["b_heads"])

    mu = out[:B, :A]
    sigma = out[:B, A:2 * A]
    return mu, sigma


def init_raw_params(key, in_channels, num_hidden1, num_outputs):
    """nn.Linear-default init U(-1/sqrt(fan_in), +); fc_mu / fc_sigma biases zeroed,
    matching the PyTorch module's __init__."""
    k1, k2, k3, k4 = jax.random.split(key, 4)
    bound1 = 1.0 / jnp.sqrt(in_channels)
    w1 = jax.random.uniform(k1, (num_hidden1, in_channels), jnp.float32,
                            -bound1, bound1)
    b1 = jax.random.uniform(k2, (num_hidden1,), jnp.float32, -bound1, bound1)
    bound2 = 1.0 / jnp.sqrt(num_hidden1)
    wmu = jax.random.uniform(k3, (num_outputs, num_hidden1), jnp.float32,
                             -bound2, bound2)
    wsig = jax.random.uniform(k4, (num_outputs, num_hidden1), jnp.float32,
                              -bound2, bound2)
    bmu = jnp.zeros((num_outputs,), jnp.float32)
    bsig = jnp.zeros((num_outputs,), jnp.float32)
    return dict(w1=w1, b1=b1, wmu=wmu, bmu=bmu, wsig=wsig, bsig=bsig)


def prepare_params(raw, gain=1.0):
    """Pre-transpose / fuse / pad weights for the kernel:
       - w1t: (Cin, H) bf16
       - fused head weight (H, L) bf16, L = max(128, round_up(2A, 128)):
           lanes [0,A) = Wmu^T, lanes [A,2A) = Wsig^T, rest zero
       - fused head bias (1, L) f32: [bmu, bsig - gain, 0...]   (gain folded in)
    """
    H, _ = raw["w1"].shape
    A = raw["wmu"].shape[0]
    L = max(128, _round_up(2 * A, 128))

    w_heads = jnp.zeros((H, L), jnp.float32)
    w_heads = w_heads.at[:, :A].set(raw["wmu"].T)
    w_heads = w_heads.at[:, A:2 * A].set(raw["wsig"].T)

    b_heads = jnp.zeros((1, L), jnp.float32)
    b_heads = b_heads.at[0, :A].set(raw["bmu"])
    b_heads = b_heads.at[0, A:2 * A].set(raw["bsig"] - gain)

    return {
        "w1t": raw["w1"].T.astype(jnp.bfloat16),        # (Cin, H)
        "b1": raw["b1"].reshape(1, H),                  # (1, H) f32
        "w_heads": w_heads.astype(jnp.bfloat16),        # (H, L)
        "b_heads": b_heads,                             # (1, L) f32
        "num_outputs": A,
    }


def reference_forward(x, raw, gain=1.0):
    """Pure-JAX f32 reference reproducing the PyTorch module exactly."""
    h = x @ raw["w1"].T + raw["b1"]
    p = jax.nn.softmax(h, axis=-1)
    mu = p @ raw["wmu"].T + raw["bmu"]
    sigma = jnp.exp(p @ raw["wsig"].T + raw["bsig"] - gain)
    return mu, sigma


if __name__ == "__main__":
    # Small shapes consistent with the module: flat feature input.
    batch = 8
    in_channels = 32
    num_hidden1 = 128
    num_outputs = 4          # action_space.shape[0]
    gain = 1.0

    key = jax.random.PRNGKey(0)
    kx, kp = jax.random.split(key)
    x = jax.random.normal(kx, (batch, in_channels), jnp.float32)
    raw = init_raw_params(kp, in_channels, num_hidden1, num_outputs)
    params = prepare_params(raw, gain=gain)

    mu, sigma = actor_sigma1_forward(x, params)
    jax.block_until_ready((mu, sigma))

    mu_ref, sigma_ref = reference_forward(x, raw, gain=gain)
    # bf16 matmul operands + approx EUP reciprocal -> loosened tolerance vs f32 ref.
    assert mu.shape == (batch, num_outputs) and sigma.shape == (batch, num_outputs)
    assert jnp.allclose(mu, mu_ref, atol=1e-2, rtol=5e-2), "mu mismatch"
    assert jnp.allclose(sigma, sigma_ref, atol=1e-2, rtol=5e-2), "sigma mismatch"
    assert bool(jnp.all(sigma > 0)), "sigma must be positive"

    print("KERNEL_OK")
</pallas_src>

<mosaic_0001>
module attributes {stable_mosaic.version = 11 : i64} {
  func.func @_actor_sigma1_kernel(%arg0: i32, %arg1: memref<8x32xbf16, #tpu.memory_space<vmem>>, %arg2: memref<32x128xbf16, #tpu.memory_space<vmem>>, %arg3: memref<1x128xf32, #tpu.memory_space<vmem>>, %arg4: memref<128x128xbf16, #tpu.memory_space<vmem>>, %arg5: memref<1x128xf32, #tpu.memory_space<vmem>>, %arg6: memref<8x128xf32, #tpu.memory_space<vmem>>) attributes {dimension_semantics = [#tpu.dimension_semantics<parallel>], iteration_bounds = array<i64: 1>, scalar_prefetch = 0 : i64, scratch_operands = 0 : i64, tpu.core_type = #tpu.core_type<tc>, window_params = [{transform_indices = @transform_0, window_bounds = array<i64: 8, 32>}, {pipeline_mode = #tpu.pipeline_mode<synchronous>, transform_indices = @transform_1, window_bounds = array<i64: 32, 128>}, {pipeline_mode = #tpu.pipeline_mode<synchronous>, transform_indices = @transform_2, window_bounds = array<i64: 1, 128>}, {pipeline_mode = #tpu.pipeline_mode<synchronous>, transform_indices = @transform_3, window_bounds = array<i64: 128, 128>}, {pipeline_mode = #tpu.pipeline_mode<synchronous>, transform_indices = @transform_4, window_bounds = array<i64: 1, 128>}, {transform_indices = @transform_5, window_bounds = array<i64: 8, 128>}]} {
    %c0 = arith.constant 0 : index
    %c0_0 = arith.constant 0 : index
    %0 = vector.load %arg1[%c0, %c0_0] : memref<8x32xbf16, #tpu.memory_space<vmem>>, vector<8x32xbf16>
    %c0_1 = arith.constant 0 : index
    %c0_2 = arith.constant 0 : index
    %1 = vector.load %arg2[%c0_1, %c0_2] : memref<32x128xbf16, #tpu.memory_space<vmem>>, vector<32x128xbf16>
    %cst = arith.constant dense<0.000000e+00> : vector<8x128xf32>
    %2 = tpu.matmul %0, %1, %cst {dimension_numbers = #tpu.dot_dimension_numbers<[1], [0], [0], [1], [0, 0, 1, 1], [], []>} : vector<8x32xbf16>, vector<32x128xbf16>, vector<8x128xf32> -> vector<8x128xf32>
    %c0_3 = arith.constant 0 : index
    %c0_4 = arith.constant 0 : index
    %3 = vector.load %arg3[%c0_3, %c0_4] : memref<1x128xf32, #tpu.memory_space<vmem>>, vector<1x128xf32>
    %4 = vector.broadcast %3 : vector<1x128xf32> to vector<8x128xf32>
    %5 = arith.addf %2, %4 : vector<8x128xf32>
    %cst_5 = arith.constant dense<0xFF800000> : vector<8xf32>
    %6 = vector.multi_reduction <maximumf>, %5, %cst_5 [1] : vector<8x128xf32> to vector<8xf32>
    %7 = vector.shape_cast %6 : vector<8xf32> to vector<8x1xf32>
    %8 = vector.broadcast %7 : vector<8x1xf32> to vector<8x128xf32>
    %9 = arith.subf %5, %8 : vector<8x128xf32>
    %10 = math.exp %9 : vector<8x128xf32>
    %cst_6 = arith.constant dense<0.000000e+00> : vector<8xf32>
    %11 = vector.multi_reduction <add>, %10, %cst_6 [1] : vector<8x128xf32> to vector<8xf32>
    %12 = vector.shape_cast %11 : vector<8xf32> to vector<8x1xf32>
    %13 = tpu.reciprocal %12 {approx = true} : vector<8x1xf32> -> vector<8x1xf32>
    %14 = vector.broadcast %13 : vector<8x1xf32> to vector<8x128xf32>
    %15 = arith.mulf %10, %14 : vector<8x128xf32>
    %16 = arith.truncf %15 : vector<8x128xf32> to vector<8x128xbf16>
    %c0_7 = arith.constant 0 : index
    %c0_8 = arith.constant 0 : index
    %17 = vector.load %arg4[%c0_7, %c0_8] : memref<128x128xbf16, #tpu.memory_space<vmem>>, vector<128x128xbf16>
    %cst_9 = arith.constant dense<0.000000e+00> : vector<8x128xf32>
    %18 = tpu.matmul %16, %17, %cst_9 {dimension_numbers = #tpu.dot_dimension_numbers<[1], [0], [0], [1], [0, 0, 1, 1], [], []>} : vector<8x128xbf16>, vector<128x128xbf16>, vector<8x128xf32> -> vector<8x128xf32>
    %c0_10 = arith.constant 0 : index
    %c0_11 = arith.constant 0 : index
    %19 = vector.load %arg5[%c0_10, %c0_11] : memref<1x128xf32, #tpu.memory_space<vmem>>, vector<1x128xf32>
    %20 = vector.broadcast %19 : vector<1x128xf32> to vector<8x128xf32>
    %21 = arith.addf %18, %20 : vector<8x128xf32>
    %22 = tpu.iota {dimensions = array<i32: 1>} : vector<8x128xi32>
    %c4_i32 = arith.constant 4 : i32
    %23 = vector.broadcast %c4_i32 : i32 to vector<8x128xi32>
    %24 = arith.cmpi sge, %22, %23 : vector<8x128xi32>
    %c8_i32 = arith.constant 8 : i32
    %25 = vector.broadcast %c8_i32 : i32 to vector<8x128xi32>
    %26 = arith.cmpi slt, %22, %25 : vector<8x128xi32>
    %27 = arith.andi %24, %26 : vector<8x128xi1>
    %28 = math.exp %21 : vector<8x128xf32>
    %29 = arith.select %27, %28, %21 : vector<8x128xi1>, vector<8x128xf32>
    %c0_12 = arith.constant 0 : index
    %c0_13 = arith.constant 0 : index
    %30 = vector.load %arg6[%c0_12, %c0_13] : memref<8x128xf32, #tpu.memory_space<vmem>>, vector<8x128xf32>
    tpu.vector_store %arg6[%c0_12, %c0_13], %29 {strides = array<i32>} : memref<8x128xf32, #tpu.memory_space<vmem>>, vector<8x128xf32>,
    return
  }
  func.func @transform_0(%arg0: i32) -> (i32, i32) {
    %c0_i32 = arith.constant 0 : i32
    %c0_i32_0 = arith.constant 0 : i32
    return %arg0, %c0_i32 : i32, i32
  }
  func.func @transform_1(%arg0: i32) -> (i32, i32) {
    %c0_i32 = arith.constant 0 : i32
    %c0_i32_0 = arith.constant 0 : i32
    %c0_i32_1 = arith.constant 0 : i32
    return %c0_i32, %c0_i32_0 : i32, i32
  }
  func.func @transform_2(%arg0: i32) -> (i32, i32) {
    %c0_i32 = arith.constant 0 : i32
    %c0_i32_0 = arith.constant 0 : i32
    %c0_i32_1 = arith.constant 0 : i32
    return %c0_i32, %c0_i32_0 : i32, i32
  }
  func.func @transform_3(%arg0: i32) -> (i32, i32) {
    %c0_i32 = arith.constant 0 : i32
    %c0_i32_0 = arith.constant 0 : i32
    %c0_i32_1 = arith.constant 0 : i32
    return %c0_i32, %c0_i32_0 : i32, i32
  }
  func.func @transform_4(%arg0: i32) -> (i32, i32) {
    %c0_i32 = arith.constant 0 : i32
    %c0_i32_0 = arith.constant 0 : i32
    %c0_i32_1 = arith.constant 0 : i32
    return %c0_i32, %c0_i32_0 : i32, i32
  }
  func.func @transform_5(%arg0: i32) -> (i32, i32) {
    %c0_i32 = arith.constant 0 : i32
    %c0_i32_0 = arith.constant 0 : i32
    return %arg0, %c0_i32 : i32, i32
  }
}

</mosaic_0001>

<llo_original>
// kernel: tpu_custom_call.1
$region0: #{tpu_custom_call.1}
  #allocation0 [shape = 'u32[]', space=smem, size = 0x4, offset = 0x4, fixed_abs, tag = 'smem constant byte address 0x4 - core index']
  #allocation1 [shape = 'u32[144,128]{1,0:T(1,128)}', space=vmem, size = 0x12000, scoped, tag = 'internal scratch']
  %s0 = inlined_call_operand.hbm [shape: bf16[8,32], index: 0, kind: input, shape index: {}]
  %s1 = inlined_call_operand.hbm [shape: bf16[32,128], index: 1, kind: input, shape index: {}]
  %s2 = inlined_call_operand.vmem [shape: f32[1,128], index: 2, kind: input, shape index: {}]
  %s3 = inlined_call_operand.hbm [shape: bf16[128,128], index: 3, kind: input, shape index: {}]
  %s4 = inlined_call_operand.vmem [shape: f32[1,128], index: 4, kind: input, shape index: {}]
  %s5 = inlined_call_operand.hbm [shape: f32[8,128], index: 5, kind: output, shape index: {}]
  %s6 = sld [smem:[#allocation0]]
  $region42: #{tpu_custom_call.1} parent=0
    _
  %s8 = ssub.s32 1, %s6
  %s9 = scalar_select 0, %s8, %s6
  $region1: #{tpu_custom_call.1} parent=0
    #allocation2 [shape = 'u8[2048]{0}', space=vmem, size = 0x800, scoped, tag = 'input window, operand 0, single buffered']
    #allocation3 [shape = 's32[1]{0}', space=sflag, size = 0x4, scoped, tag = 'scoped memory for tpu_custom_call.1']
    #allocation4 [shape = 's32[1]{0}', space=sflag, size = 0x4, scoped, tag = 'scoped memory for tpu_custom_call.1']
    #allocation5 [shape = 'u8[8192]{0}', space=vmem, size = 0x2000, scoped, tag = 'input window, operand 1, single buffered']
    #allocation6 [shape = 's32[1]{0}', space=sflag, size = 0x4, scoped, tag = 'scoped memory for tpu_custom_call.1']
    #allocation7 [shape = 'u8[32768]{0}', space=vmem, size = 0x8000, scoped, tag = 'input window, operand 3, single buffered']
    #allocation8 [shape = 'u8[4096]{0}', space=vmem, size = 0x1000, scoped, tag = 'output window, operand 0, single buffered']
    %10 = vsyncpa [#allocation3], 0
    %11 = vsyncpa [#allocation6], 0
    %12 = vsyncpa [#allocation4], 0
    // Predicated region
    $region2: #{tpu_custom_call.1} parent=1 // pred_check
      _
    $region3: #{tpu_custom_call.1} parent=1 // pred_check_branch
      %14 = sbr.rel (0) target = $region5
    $region4: #{tpu_custom_call.1} parent=1 // pred_region
      %s16 = ssub.s32 64, 64
      %17 = vsyncadd [#allocation3], %s16
      %s19 = sshll.u32 [#allocation2], 4
      %s20 = int_to_ptr.vmem [resolvable:$true] %s19
      %22 = dma.hbm_to_vmem [thread:$0]  %s0, 64, %s20, [#allocation3]
    $region5: #{tpu_custom_call.1} parent=1 // pred_fallthru
      _
    // Predicated region
    $region6: #{tpu_custom_call.1} parent=1 // pred_check
      _
    $region7: #{tpu_custom_call.1} parent=1 // pred_check_branch
      %24 = sbr.rel (0) target = $region9
    $region8: #{tpu_custom_call.1} parent=1 // pred_region
      %s26 = ssub.s32 256, 256
      %27 = vsyncadd [#allocation6], %s26
      %s28 = sshll.u32 [#allocation5], 4
      %s29 = int_to_ptr.vmem [resolvable:$true] %s28
      %34 = dma.hbm_to_vmem [thread:$0]  %s1, 256, %s29, [#allocation6], 64, 64, 4
    $region9: #{tpu_custom_call.1} parent=1 // pred_fallthru
      _
    // Predicated region
    $region10: #{tpu_custom_call.1} parent=1 // pred_check
      _
    $region11: #{tpu_custom_call.1} parent=1 // pred_check_branch
      %36 = sbr.rel (0) target = $region13
    $region12: #{tpu_custom_call.1} parent=1 // pred_region
      _
    $region13: #{tpu_custom_call.1} parent=1 // pred_fallthru
      _
    // Predicated region
    $region14: #{tpu_custom_call.1} parent=1 // pred_check
      _
    $region15: #{tpu_custom_call.1} parent=1 // pred_check_branch
      %38 = sbr.rel (0) target = $region17
    $region16: #{tpu_custom_call.1} parent=1 // pred_region
      %s40 = ssub.s32 1024, 1024
      %41 = vsyncadd [#allocation6], %s40
      %s42 = sshll.u32 [#allocation7], 4
      %s43 = int_to_ptr.vmem [resolvable:$true] %s42
      %48 = dma.hbm_to_vmem [thread:$0]  %s3, 1024, %s43, [#allocation6], 64, 64, 4
    $region17: #{tpu_custom_call.1} parent=1 // pred_fallthru
      _
    // Predicated region
    $region18: #{tpu_custom_call.1} parent=1 // pred_check
      _
    $region19: #{tpu_custom_call.1} parent=1 // pred_check_branch
      %50 = sbr.rel (0) target = $region21
    $region20: #{tpu_custom_call.1} parent=1 // pred_region
      _
    $region21: #{tpu_custom_call.1} parent=1 // pred_fallthru
      _
    // Predicated region
    $region22: #{tpu_custom_call.1} parent=1 // pred_check
      _
    $region23: #{tpu_custom_call.1} parent=1 // pred_check_branch
      %52 = sbr.rel (0) target = $region25
    $region24: #{tpu_custom_call.1} parent=1 // pred_region
      %53 = dma.done [#allocation3], 64
    $region25: #{tpu_custom_call.1} parent=1 // pred_fallthru
      _
    // Predicated region
    $region26: #{tpu_custom_call.1} parent=1 // pred_check
      _
    $region27: #{tpu_custom_call.1} parent=1 // pred_check_branch
      %55 = sbr.rel (0) target = $region29
    $region28: #{tpu_custom_call.1} parent=1 // pred_region
      %56 = dma.done [#allocation6], 256
    $region29: #{tpu_custom_call.1} parent=1 // pred_fallthru
      _
    // Predicated region
    $region30: #{tpu_custom_call.1} parent=1 // pred_check
      _
    $region31: #{tpu_custom_call.1} parent=1 // pred_check_branch
      %58 = sbr.rel (0) target = $region33
    $region32: #{tpu_custom_call.1} parent=1 // pred_region
      %59 = dma.done [#allocation6], 1024
    $region33: #{tpu_custom_call.1} parent=1 // pred_fallthru
      _
    %v61 = vld [vmem:[#allocation2] sm:$0xf]
    %v62 = vld [vmem:[#allocation5] sm:$0xf]
    %v63 = vld [vmem:[#allocation5 + $0x4] sm:$0xf]
    %v64 = vld [vmem:[#allocation5 + $0x8] sm:$0xf]
    %v65 = vld [vmem:[#allocation5 + $0xc] sm:$0xf]
    %v66 = vld [vmem:[%s2] sm:$0x1]
    %v68 = vlaneseq
    %v69 = vshrl.u32 %v68, 7
    %v70 = vsub.s32 0, %v69
    %v71 = vrot.slane %v66, %v70
    %v77 = vunpack.c.l.b16 %v62
    %v78 = vunpack.c.l.b16 %v63
    %v79 = vunpack.c.l.b16 %v64
    %v80 = vunpack.c.l.b16 %v65
    %v81 = vpack.c.b16 %v78, %v77
    %v82 = vpack.c.b16 %v80, %v79
    %vm85 = vcmask 261120
    %v87 = vsel %vm85, %v61, 0
    %89 = vmatprep.subr.bf16.mxu0 0
    %90 = vmatpush1.bf16.msra.mxu0 %v81
    %91 = vmatprep.subr.bf16.mxu0 0
    %92 = vmatpush1.bf16.msra.mxu0 %v82
    %93 = vmatprep.subr.bf16.mxu0 0
    %94 = vmatpush1.bf16.msra.mxu0 0
    %95 = vmatprep.subr.bf16.mxu0 0
    %96 = vmatpush1.bf16.msra.mxu0 0
    %97 = vmatprep.subr.bf16.mxu0 0
    %98 = vmatpush1.bf16.msra.mxu0 0
    %99 = vmatprep.subr.bf16.mxu0 0
    %100 = vmatpush1.bf16.msra.mxu0 0
    %101 = vmatprep.subr.bf16.mxu0 0
    %102 = vmatpush1.bf16.msra.mxu0 0
    %103 = vmatprep.subr.bf16.mxu0 0
    %104 = vmatpush1.bf16.msra.mxu0 0
    %105 = vmatprep.subr.bf16.mxu0 0
    %106 = vmatpush1.bf16.msra.mxu0 0
    %107 = vmatprep.subr.bf16.mxu0 0
    %108 = vmatpush1.bf16.msra.mxu0 0
    %109 = vmatprep.subr.bf16.mxu0 0
    %110 = vmatpush1.bf16.msra.mxu0 0
    %111 = vmatprep.subr.bf16.mxu0 0
    %112 = vmatpush1.bf16.msra.mxu0 0
    %113 = vmatprep.subr.bf16.mxu0 0
    %114 = vmatpush1.bf16.msra.mxu0 0
    %115 = vmatprep.subr.bf16.mxu0 0
    %116 = vmatpush1.bf16.msra.mxu0 0
    %117 = vmatprep.subr.bf16.mxu0 0
    %118 = vmatpush1.bf16.msra.mxu0 0
    %119 = vmatprep.subr.bf16.mxu0 0
    %120 = vmatpush1.bf16.msra.mxu0 0
    %121 = vmatprep.mubr.bf16.mxu0 0
    %122 = vmatmul.mubr.bf16.gmra.mrb[0].mxu0 %v87
    %v123 = vpop.f32.mrb[0].mxu0
    %v124 = vadd.f32 %v71, %v123
    %v125 = vpop.f32.mrb[0].mxu0
    %v126 = vpop.f32.mrb[0].mxu0
    %v127 = vpop.f32.mrb[0].mxu0
    %128 = vdwg.mxu0
    %129 = vmax.xlane.f32.xlu0 %v124
    %v130 = vpop.xlane.xlu0 %129
    %v131 = vsub.f32 %v124, %v130
    %v132 = vmul.f32 %v131, 1.442695
    %v133 = vpow.pop %v132
    %134 = vadd.xlane.f32.xlu0 %v133
    %v135 = vpop.xlane.xlu0 %134
    %v136 = vrcp.pop %v135
    %v137 = vmul.f32 %v133, %v136
    %v138 = vpack.c.bf16 %v137, %v137
    %v139 = vld [vmem:[#allocation7] sm:$0xf]
    %v140 = vld [vmem:[#allocation7 + $0x4] sm:$0xf]
    %v141 = vld [vmem:[#allocation7 + $0x8] sm:$0xf]
    %v142 = vld [vmem:[#allocation7 + $0xc] sm:$0xf]
    %v143 = vld [vmem:[#allocation7 + $0x10] sm:$0xf]
    %v144 = vld [vmem:[#allocation7 + $0x14] sm:$0xf]
    %v145 = vld [vmem:[#allocation7 + $0x18] sm:$0xf]
    %v146 = vld [vmem:[#allocation7 + $0x1c] sm:$0xf]
    %v147 = vld [vmem:[#allocation7 + $0x20] sm:$0xf]
    %v148 = vld [vmem:[#allocation7 + $0x24] sm:$0xf]
    %v149 = vld [vmem:[#allocation7 + $0x28] sm:$0xf]
    %v150 = vld [vmem:[#allocation7 + $0x2c] sm:$0xf]
    %v151 = vld [vmem:[#allocation7 + $0x30] sm:$0xf]
    %v152 = vld [vmem:[#allocation7 + $0x34] sm:$0xf]
    %v153 = vld [vmem:[#allocation7 + $0x38] sm:$0xf]
    %v154 = vld [vmem:[#allocation7 + $0x3c] sm:$0xf]
    %v155 = vld [vmem:[%s4] sm:$0x1]
    %v157 = vlaneseq
    %v158 = vshrl.u32 %v157, 7
    %v159 = vsub.s32 0, %v158
    %v160 = vrot.slane %v155, %v159
    %v178 = vunpack.c.l.b16 %v139
    %v179 = vunpack.c.l.b16 %v140
    %v180 = vunpack.c.l.b16 %v141
    %v181 = vunpack.c.l.b16 %v142
    %v182 = vunpack.c.l.b16 %v143
    %v183 = vunpack.c.l.b16 %v144
    %v184 = vunpack.c.l.b16 %v145
    %v185 = vunpack.c.l.b16 %v146
    %v186 = vunpack.c.l.b16 %v147
    %v187 = vunpack.c.l.b16 %v148
    %v188 = vunpack.c.l.b16 %v149
    %v189 = vunpack.c.l.b16 %v150
    %v190 = vunpack.c.l.b16 %v151
    %v191 = vunpack.c.l.b16 %v152
    %v192 = vunpack.c.l.b16 %v153
    %v193 = vunpack.c.l.b16 %v154
    %v194 = vpack.c.b16 %v179, %v178
    %v195 = vpack.c.b16 %v181, %v180
    %v196 = vpack.c.b16 %v183, %v182
    %v197 = vpack.c.b16 %v185, %v184
    %v198 = vpack.c.b16 %v187, %v186
    %v199 = vpack.c.b16 %v189, %v188
    %v200 = vpack.c.b16 %v191, %v190
    %v201 = vpack.c.b16 %v193, %v192
    %210 = vmatprep.subr.bf16.mxu0 0
    %211 = vmatpush1.bf16.msra.mxu0 %v194
    %212 = vmatprep.subr.bf16.mxu0 0
    %213 = vmatpush1.bf16.msra.mxu0 %v195
    %214 = vmatprep.subr.bf16.mxu0 0
    %215 = vmatpush1.bf16.msra.mxu0 %v196
    %216 = vmatprep.subr.bf16.mxu0 0
    %217 = vmatpush1.bf16.msra.mxu0 %v197
    %218 = vmatprep.subr.bf16.mxu0 0
    %219 = vmatpush1.bf16.msra.mxu0 %v198
    %220 = vmatprep.subr.bf16.mxu0 0
    %221 = vmatpush1.bf16.msra.mxu0 %v199
    %222 = vmatprep.subr.bf16.mxu0 0
    %223 = vmatpush1.bf16.msra.mxu0 %v200
    %224 = vmatprep.subr.bf16.mxu0 0
    %225 = vmatpush1.bf16.msra.mxu0 %v201
    %226 = vmatprep.subr.bf16.mxu0 0
    %227 = vmatpush1.bf16.msra.mxu0 0
    %228 = vmatprep.subr.bf16.mxu0 0
    %229 = vmatpush1.bf16.msra.mxu0 0
    %230 = vmatprep.subr.bf16.mxu0 0
    %231 = vmatpush1.bf16.msra.mxu0 0
    %232 = vmatprep.subr.bf16.mxu0 0
    %233 = vmatpush1.bf16.msra.mxu0 0
    %234 = vmatprep.subr.bf16.mxu0 0
    %235 = vmatpush1.bf16.msra.mxu0 0
    %236 = vmatprep.subr.bf16.mxu0 0
    %237 = vmatpush1.bf16.msra.mxu0 0
    %238 = vmatprep.subr.bf16.mxu0 0
    %239 = vmatpush1.bf16.msra.mxu0 0
    %240 = vmatprep.subr.bf16.mxu0 0
    %241 = vmatpush1.bf16.msra.mxu0 0
    %242 = vmatprep.mubr.bf16.mxu0 0
    %243 = vmatmul.mubr.bf16.gmra.mrb[0].mxu0 %v138
    %v244 = vpop.f32.mrb[0].mxu0
    %v245 = vadd.f32 %v160, %v244
    %v246 = vpop.f32.mrb[0].mxu0
    %v247 = vpop.f32.mrb[0].mxu0
    %v248 = vpop.f32.mrb[0].mxu0
    %249 = vdwg.mxu0
    %v250 = vlaneseq
    %v251 = vand.u32 %v250, 127
    %vm252 = vcmp.ge.s32.totalorder %v251, 4
    %vm253 = vcmp.lt.s32.totalorder %v251, 8
    %vm254 = vmand %vm252, %vm253
    %v255 = vmul.f32 %v245, 1.442695
    %v256 = vpow.pop %v255
    %v257 = vsel %vm254, %v256, %v245
    %258 = vst [vmem:[#allocation8] sm:$0xff] %v257
    // Predicated region
    $region34: #{tpu_custom_call.1} parent=1 // pred_check
      _
    $region35: #{tpu_custom_call.1} parent=1 // pred_check_branch
      %260 = sbr.rel (0) target = $region37
    $region36: #{tpu_custom_call.1} parent=1 // pred_region
      %s262 = ssub.s32 128, 128
      %263 = vsyncadd [#allocation4], %s262
      %s265 = sshll.u32 [#allocation8], 4
      %s266 = int_to_ptr.vmem [resolvable:$true] %s265
      %268 = dma.vmem_to_hbm [thread:$0]  %s266, 128, %s5, [#allocation4]
    $region37: #{tpu_custom_call.1} parent=1 // pred_fallthru
      _
    // Predicated region
    $region38: #{tpu_custom_call.1} parent=1 // pred_check
      _
    $region39: #{tpu_custom_call.1} parent=1 // pred_check_branch
      %270 = sbr.rel (0) target = $region41
    $region40: #{tpu_custom_call.1} parent=1 // pred_region
      %271 = dma.done [#allocation4], 128
    $region41: #{tpu_custom_call.1} parent=1 // pred_fallthru
      _
    %272 = vsyncpa [#allocation3], 1
    %273 = vsyncpa [#allocation6], 1
    %274 = vsyncpa [#allocation4], 1

</llo_original>
